<compile_context>
chip_gen: v5e
topology: v5e:2x2
jax: 0.10.0
libtpu: 0.0.40
codegen_flags: <defaults>
</compile_context>

<pallas_src>
import jax
import jax.numpy as jnp
from jax.experimental import pallas as pl
from jax.experimental.pallas import tpu as pltpu

N_NODES = 105        # hard-coded in the PyTorch module (repeat(1, 105, 1) / reshape(105, 105))
NPAD = 128           # node dim padded to a full lane width (lane-dense stores, clean transpose)
FEATURE_SIZE = 64    # self.feature_size
HIDDEN = 8           # linear1 output width


def _pairwise_kernel(x_ref, xt_ref, pa_ref, pbt_ref, ba_ref, hw2_ref, c0_ref,
                     out_ref, a_scr, bt_scr):
    """Fused projection + pairwise edge-score kernel.

    x_ref  : (NPAD, F)      VMEM  zero-padded node features (rows >= 105 are 0)
    xt_ref : (F, NPAD)      VMEM  transposed zero-padded node features
    pa_ref : (F, HIDDEN)    VMEM  0.5 * (mask*Wl^T) @ W1l^T
    pbt_ref: (HIDDEN, F)    VMEM  0.5 * W1r @ (mask*Wl^T)^T
    ba_ref : (1, HIDDEN)    VMEM  0.5 * ((W1l + W1r) @ bl + b1)
    hw2_ref: (HIDDEN,)      SMEM  0.5 * W2
    c0_ref : (1,)           SMEM  b2 + 0.5 * sum(W2)
    out_ref: (NPAD, NPAD)   VMEM  0.5 * (sigmoid(logits) + sigmoid(logits)^T)  (padded)
    """
    # Folded node-embedding + linear1 projections on the otherwise-idle MXU.
    a_scr[...] = jnp.dot(x_ref[...], pa_ref[...],
                         preferred_element_type=jnp.float32) + ba_ref[...]      # (NPAD, 8)
    bt_scr[...] = jnp.dot(pbt_ref[...], xt_ref[...],
                          preferred_element_type=jnp.float32)                    # (8, NPAD)

    # logits[i, j] = b2 + sum_k W2[k] * sigmoid(arg_k(i,j))
    #             = c0 + sum_k hw2[k] * tanh(a[i,k] + bt[k,j])
    acc = jnp.full((NPAD, NPAD), c0_ref[0], jnp.float32)
    for k in range(HIDDEN):  # linear2 contraction, fully unrolled (HIDDEN == 8)
        acc = acc + hw2_ref[k] * jnp.tanh(a_scr[:, k:k + 1] + bt_scr[k:k + 1, :])

    # M = sigmoid(acc);  sym = 0.5*(M + M^T) = 0.5 + 0.25*(tanh(acc/2) + tanh(acc/2)^T)
    t = jnp.tanh(0.5 * acc)
    out_ref[...] = 0.25 * (t + t.T) + 0.5


def pairwise_sym_mask_padded(x, node_feature_mask, Wl, bl, W1, b1, W2, b2):
    """Pallas-computed symmetric edge-score matrix, returned PADDED to (128, 128).

    Only rows/cols < N_NODES are meaningful; consumers must index < N_NODES
    (edge_index satisfies this by construction).
    """
    n, f = x.shape
    f32 = jnp.float32
    W1l = W1[:, :FEATURE_SIZE].astype(f32)       # (8, 64), acts on f1 (= X_i)
    W1r = W1[:, FEATURE_SIZE:].astype(f32)       # (8, 64), acts on f2 (= X_j)
    w2 = W2.reshape(HIDDEN).astype(f32)

    # Fold linear -> linear1 (no nonlinearity between them) + feature mask + the 0.5
    # pre-scale for the tanh form of sigmoid.  All of these are parameter-only ops.
    masked_WlT = node_feature_mask[:, None].astype(f32) * Wl.T.astype(f32)       # (F, 64)
    Pa = 0.5 * (masked_WlT @ W1l.T)                                              # (F, 8)
    Pbt = 0.5 * (W1r @ masked_WlT.T)                                             # (8, F)
    ba = (0.5 * ((W1l + W1r) @ bl.astype(f32) + b1.astype(f32))).reshape(1, HIDDEN)
    hw2 = 0.5 * w2                                                               # (8,)  SMEM
    c0 = (b2.reshape(()).astype(f32) + 0.5 * jnp.sum(w2)).reshape(1)             # (1,)  SMEM

    # Only x-dependent wrapper work: one zero-pad in each layout (node dim -> 128).
    xf = x.astype(f32)
    x_pad = jnp.zeros((NPAD, f), f32).at[:n, :].set(xf)                          # (128, F)
    xt_pad = jnp.zeros((f, NPAD), f32).at[:, :n].set(xf.T)                       # (F, 128)

    vmem = pl.BlockSpec(memory_space=pltpu.MemorySpace.VMEM)
    smem = pl.BlockSpec(memory_space=pltpu.MemorySpace.SMEM)

    out_pad = pl.pallas_call(
        _pairwise_kernel,
        out_shape=jax.ShapeDtypeStruct((NPAD, NPAD), jnp.float32),
        in_specs=[vmem, vmem, vmem, vmem, vmem, smem, smem],
        out_specs=vmem,
        scratch_shapes=[pltpu.VMEM((NPAD, HIDDEN), jnp.float32),
                        pltpu.VMEM((HIDDEN, NPAD), jnp.float32)],
    )(x_pad, xt_pad, Pa, Pbt, ba, hw2, c0)
    return out_pad


def mlp_subgraph_forward(x, edge_index, params, *, training=False, key=None):
    """Mirrors MLP_subgraph.forward: returns (edge_attr, pos_penalty)."""
    sym_pad = pairwise_sym_mask_padded(
        x, params["node_feature_mask"], params["Wl"], params["bl"],
        params["W1"], params["b1"], params["W2"], params["b2"])

    # Gather directly from the padded lane-dense matrix (edge_index < N_NODES).
    log_alpha = sym_pad[edge_index[0], edge_index[1]]
    if training:
        # _concrete_sample training branch (beta=0.5).
        # TODO(synk): PyTorch's torch.rand logistic noise cannot be bit-matched; jax.random is used.
        beta = 0.5
        u = jax.random.uniform(key, log_alpha.shape, minval=1e-7, maxval=1.0 - 1e-7)
        noise = jnp.log(u) - jnp.log(1.0 - u)
        edge_prob = jax.nn.sigmoid((noise + log_alpha) / beta)
    else:
        edge_prob = jax.nn.sigmoid(log_alpha)

    edge_attr = jnp.stack([edge_prob, 1.0 - edge_prob], axis=1)   # (E, 2)
    pos_penalty = jnp.var(edge_attr, ddof=1)                      # torch.var() default (unbiased)
    return edge_attr, pos_penalty


def _sym_mask_reference(x, node_feature_mask, Wl, bl, W1, b1, W2, b2):
    """Pure-JAX reference mirroring the PyTorch code literally."""
    xg = x * node_feature_mask
    X = xg @ Wl.T + bl
    f1 = jnp.repeat(X[:, None, :], N_NODES, axis=1).reshape(-1, FEATURE_SIZE)
    f2 = jnp.repeat(X[None, :, :], N_NODES, axis=0).reshape(-1, FEATURE_SIZE)
    f12 = jnp.concatenate([f1, f2], axis=-1)
    h = jax.nn.sigmoid(f12 @ W1.T + b1)
    s = jax.nn.sigmoid(h @ W2.T + b2)
    M = s.reshape(N_NODES, N_NODES)
    return 0.5 * (M + M.T)


if __name__ == "__main__":
    key = jax.random.PRNGKey(0)
    ks = jax.random.split(key, 10)

    node_features_num = 16        # small synthetic choice
    num_edges = 200

    x = jax.random.normal(ks[0], (N_NODES, node_features_num), jnp.float32)
    edge_index = jax.random.randint(ks[1], (2, num_edges), 0, N_NODES)

    params = {
        "node_feature_mask": jax.random.uniform(ks[2], (node_features_num,), jnp.float32),
        "Wl": jax.random.normal(ks[3], (FEATURE_SIZE, node_features_num), jnp.float32) * 0.1,
        "bl": jax.random.normal(ks[4], (FEATURE_SIZE,), jnp.float32) * 0.1,
        "W1": jax.random.normal(ks[5], (HIDDEN, 2 * FEATURE_SIZE), jnp.float32) * 0.1,
        "b1": jax.random.normal(ks[6], (HIDDEN,), jnp.float32) * 0.1,
        "W2": jax.random.normal(ks[7], (1, HIDDEN), jnp.float32) * 0.1,
        "b2": jax.random.normal(ks[8], (1,), jnp.float32) * 0.1,
    }

    # Kernel vs pure-JAX reference for the fused pairwise MLP (valid region only).
    sym_pad = pairwise_sym_mask_padded(
        x, params["node_feature_mask"], params["Wl"], params["bl"],
        params["W1"], params["b1"], params["W2"], params["b2"])
    sym_pad = jax.block_until_ready(sym_pad)
    sym = sym_pad[:N_NODES, :N_NODES]
    sym_ref = _sym_mask_reference(x, params["node_feature_mask"], params["Wl"], params["bl"],
                                  params["W1"], params["b1"], params["W2"], params["b2"])
    assert jnp.allclose(sym, sym_ref, atol=1e-4), "Pallas kernel mismatch vs reference"

    # Full forward (eval-mode concrete sample for determinism; training branch also implemented).
    edge_attr, pos_penalty = mlp_subgraph_forward(x, edge_index, params, training=False)
    jax.block_until_ready(edge_attr)
    jax.block_until_ready(pos_penalty)

    # Spot-check the gather path against the reference matrix.
    ref_prob = jax.nn.sigmoid(sym_ref[edge_index[0], edge_index[1]])
    assert jnp.allclose(edge_attr[:, 0], ref_prob, atol=1e-4), "edge_attr mismatch vs reference"

    print("KERNEL_OK")
</pallas_src>

<mosaic_0001>
module attributes {stable_mosaic.version = 11 : i64} {
  func.func @_pairwise_kernel(%arg0: memref<128x16xf32, #tpu.memory_space<vmem>>, %arg1: memref<16x128xf32, #tpu.memory_space<vmem>>, %arg2: memref<16x8xf32, #tpu.memory_space<vmem>>, %arg3: memref<8x16xf32, #tpu.memory_space<vmem>>, %arg4: memref<1x8xf32, #tpu.memory_space<vmem>>, %arg5: memref<8xf32, #tpu.memory_space<smem>>, %arg6: memref<1xf32, #tpu.memory_space<smem>>, %arg7: memref<128x128xf32, #tpu.memory_space<vmem>>, %arg8: memref<128x8xf32, #tpu.memory_space<vmem>>, %arg9: memref<8x128xf32, #tpu.memory_space<vmem>>) attributes {dimension_semantics = [], scalar_prefetch = 0 : i64, scratch_operands = 2 : i64, tpu.core_type = #tpu.core_type<tc>} {
    %c0 = arith.constant 0 : index
    %c0_0 = arith.constant 0 : index
    %0 = vector.load %arg0[%c0, %c0_0] : memref<128x16xf32, #tpu.memory_space<vmem>>, vector<128x16xf32>
    %c0_1 = arith.constant 0 : index
    %c0_2 = arith.constant 0 : index
    %1 = vector.load %arg2[%c0_1, %c0_2] : memref<16x8xf32, #tpu.memory_space<vmem>>, vector<16x8xf32>
    %cst = arith.constant dense<0.000000e+00> : vector<128x8xf32>
    %2 = tpu.matmul %0, %1, %cst {dimension_numbers = #tpu.dot_dimension_numbers<[1], [0], [0], [1], [0, 0, 1, 1], [], []>} : vector<128x16xf32>, vector<16x8xf32>, vector<128x8xf32> -> vector<128x8xf32>
    %c0_3 = arith.constant 0 : index
    %c0_4 = arith.constant 0 : index
    %3 = vector.load %arg4[%c0_3, %c0_4] : memref<1x8xf32, #tpu.memory_space<vmem>>, vector<1x8xf32>
    %4 = vector.broadcast %3 : vector<1x8xf32> to vector<128x8xf32>
    %5 = arith.addf %2, %4 : vector<128x8xf32>
    %c0_5 = arith.constant 0 : index
    %c0_6 = arith.constant 0 : index
    %6 = vector.load %arg8[%c0_5, %c0_6] : memref<128x8xf32, #tpu.memory_space<vmem>>, vector<128x8xf32>
    tpu.vector_store %arg8[%c0_5, %c0_6], %5 {strides = array<i32>} : memref<128x8xf32, #tpu.memory_space<vmem>>, vector<128x8xf32>,
    %c0_7 = arith.constant 0 : index
    %c0_8 = arith.constant 0 : index
    %7 = vector.load %arg3[%c0_7, %c0_8] : memref<8x16xf32, #tpu.memory_space<vmem>>, vector<8x16xf32>
    %c0_9 = arith.constant 0 : index
    %c0_10 = arith.constant 0 : index
    %8 = vector.load %arg1[%c0_9, %c0_10] : memref<16x128xf32, #tpu.memory_space<vmem>>, vector<16x128xf32>
    %cst_11 = arith.constant dense<0.000000e+00> : vector<8x128xf32>
    %9 = tpu.matmul %7, %8, %cst_11 {dimension_numbers = #tpu.dot_dimension_numbers<[1], [0], [0], [1], [0, 0, 1, 1], [], []>} : vector<8x16xf32>, vector<16x128xf32>, vector<8x128xf32> -> vector<8x128xf32>
    %c0_12 = arith.constant 0 : index
    %c0_13 = arith.constant 0 : index
    %10 = vector.load %arg9[%c0_12, %c0_13] : memref<8x128xf32, #tpu.memory_space<vmem>>, vector<8x128xf32>
    tpu.vector_store %arg9[%c0_12, %c0_13], %9 {strides = array<i32>} : memref<8x128xf32, #tpu.memory_space<vmem>>, vector<8x128xf32>,
    %c0_14 = arith.constant 0 : index
    %11 = memref.load %arg6[%c0_14] : memref<1xf32, #tpu.memory_space<smem>>
    %12 = vector.broadcast %11 : f32 to vector<128x128xf32>
    %c0_15 = arith.constant 0 : index
    %13 = memref.load %arg5[%c0_15] : memref<8xf32, #tpu.memory_space<smem>>
    %c0_16 = arith.constant 0 : index
    %c0_17 = arith.constant 0 : index
    %14 = vector.load %arg8[%c0_16, %c0_17] : memref<128x8xf32, #tpu.memory_space<vmem>>, vector<128x1xf32>
    %c0_18 = arith.constant 0 : index
    %c0_19 = arith.constant 0 : index
    %15 = vector.load %arg9[%c0_18, %c0_19] : memref<8x128xf32, #tpu.memory_space<vmem>>, vector<1x128xf32>
    %16 = vector.broadcast %14 : vector<128x1xf32> to vector<128x128xf32>
    %17 = vector.broadcast %15 : vector<1x128xf32> to vector<128x128xf32>
    %18 = arith.addf %16, %17 : vector<128x128xf32>
    %19 = math.tanh %18 : vector<128x128xf32>
    %20 = vector.broadcast %13 : f32 to vector<128x128xf32>
    %21 = arith.mulf %20, %19 : vector<128x128xf32>
    %22 = arith.addf %12, %21 : vector<128x128xf32>
    %c1 = arith.constant 1 : index
    %23 = memref.load %arg5[%c1] : memref<8xf32, #tpu.memory_space<smem>>
    %c0_20 = arith.constant 0 : index
    %c1_21 = arith.constant 1 : index
    %24 = vector.load %arg8[%c0_20, %c1_21] : memref<128x8xf32, #tpu.memory_space<vmem>>, vector<128x1xf32>
    %c1_22 = arith.constant 1 : index
    %c0_23 = arith.constant 0 : index
    %25 = vector.load %arg9[%c1_22, %c0_23] : memref<8x128xf32, #tpu.memory_space<vmem>>, vector<1x128xf32>
    %26 = vector.broadcast %24 : vector<128x1xf32> to vector<128x128xf32>
    %27 = vector.broadcast %25 : vector<1x128xf32> to vector<128x128xf32>
    %28 = arith.addf %26, %27 : vector<128x128xf32>
    %29 = math.tanh %28 : vector<128x128xf32>
    %30 = vector.broadcast %23 : f32 to vector<128x128xf32>
    %31 = arith.mulf %30, %29 : vector<128x128xf32>
    %32 = arith.addf %22, %31 : vector<128x128xf32>
    %c2 = arith.constant 2 : index
    %33 = memref.load %arg5[%c2] : memref<8xf32, #tpu.memory_space<smem>>
    %c0_24 = arith.constant 0 : index
    %c2_25 = arith.constant 2 : index
    %34 = vector.load %arg8[%c0_24, %c2_25] : memref<128x8xf32, #tpu.memory_space<vmem>>, vector<128x1xf32>
    %c2_26 = arith.constant 2 : index
    %c0_27 = arith.constant 0 : index
    %35 = vector.load %arg9[%c2_26, %c0_27] : memref<8x128xf32, #tpu.memory_space<vmem>>, vector<1x128xf32>
    %36 = vector.broadcast %34 : vector<128x1xf32> to vector<128x128xf32>
    %37 = vector.broadcast %35 : vector<1x128xf32> to vector<128x128xf32>
    %38 = arith.addf %36, %37 : vector<128x128xf32>
    %39 = math.tanh %38 : vector<128x128xf32>
    %40 = vector.broadcast %33 : f32 to vector<128x128xf32>
    %41 = arith.mulf %40, %39 : vector<128x128xf32>
    %42 = arith.addf %32, %41 : vector<128x128xf32>
    %c3 = arith.constant 3 : index
    %43 = memref.load %arg5[%c3] : memref<8xf32, #tpu.memory_space<smem>>
    %c0_28 = arith.constant 0 : index
    %c3_29 = arith.constant 3 : index
    %44 = vector.load %arg8[%c0_28, %c3_29] : memref<128x8xf32, #tpu.memory_space<vmem>>, vector<128x1xf32>
    %c3_30 = arith.constant 3 : index
    %c0_31 = arith.constant 0 : index
    %45 = vector.load %arg9[%c3_30, %c0_31] : memref<8x128xf32, #tpu.memory_space<vmem>>, vector<1x128xf32>
    %46 = vector.broadcast %44 : vector<128x1xf32> to vector<128x128xf32>
    %47 = vector.broadcast %45 : vector<1x128xf32> to vector<128x128xf32>
    %48 = arith.addf %46, %47 : vector<128x128xf32>
    %49 = math.tanh %48 : vector<128x128xf32>
    %50 = vector.broadcast %43 : f32 to vector<128x128xf32>
    %51 = arith.mulf %50, %49 : vector<128x128xf32>
    %52 = arith.addf %42, %51 : vector<128x128xf32>
    %c4 = arith.constant 4 : index
    %53 = memref.load %arg5[%c4] : memref<8xf32, #tpu.memory_space<smem>>
    %c0_32 = arith.constant 0 : index
    %c4_33 = arith.constant 4 : index
    %54 = vector.load %arg8[%c0_32, %c4_33] : memref<128x8xf32, #tpu.memory_space<vmem>>, vector<128x1xf32>
    %c4_34 = arith.constant 4 : index
    %c0_35 = arith.constant 0 : index
    %55 = vector.load %arg9[%c4_34, %c0_35] : memref<8x128xf32, #tpu.memory_space<vmem>>, vector<1x128xf32>
    %56 = vector.broadcast %54 : vector<128x1xf32> to vector<128x128xf32>
    %57 = vector.broadcast %55 : vector<1x128xf32> to vector<128x128xf32>
    %58 = arith.addf %56, %57 : vector<128x128xf32>
    %59 = math.tanh %58 : vector<128x128xf32>
    %60 = vector.broadcast %53 : f32 to vector<128x128xf32>
    %61 = arith.mulf %60, %59 : vector<128x128xf32>
    %62 = arith.addf %52, %61 : vector<128x128xf32>
    %c5 = arith.constant 5 : index
    %63 = memref.load %arg5[%c5] : memref<8xf32, #tpu.memory_space<smem>>
    %c0_36 = arith.constant 0 : index
    %c5_37 = arith.constant 5 : index
    %64 = vector.load %arg8[%c0_36, %c5_37] : memref<128x8xf32, #tpu.memory_space<vmem>>, vector<128x1xf32>
    %c5_38 = arith.constant 5 : index
    %c0_39 = arith.constant 0 : index
    %65 = vector.load %arg9[%c5_38, %c0_39] : memref<8x128xf32, #tpu.memory_space<vmem>>, vector<1x128xf32>
    %66 = vector.broadcast %64 : vector<128x1xf32> to vector<128x128xf32>
    %67 = vector.broadcast %65 : vector<1x128xf32> to vector<128x128xf32>
    %68 = arith.addf %66, %67 : vector<128x128xf32>
    %69 = math.tanh %68 : vector<128x128xf32>
    %70 = vector.broadcast %63 : f32 to vector<128x128xf32>
    %71 = arith.mulf %70, %69 : vector<128x128xf32>
    %72 = arith.addf %62, %71 : vector<128x128xf32>
    %c6 = arith.constant 6 : index
    %73 = memref.load %arg5[%c6] : memref<8xf32, #tpu.memory_space<smem>>
    %c0_40 = arith.constant 0 : index
    %c6_41 = arith.constant 6 : index
    %74 = vector.load %arg8[%c0_40, %c6_41] : memref<128x8xf32, #tpu.memory_space<vmem>>, vector<128x1xf32>
    %c6_42 = arith.constant 6 : index
    %c0_43 = arith.constant 0 : index
    %75 = vector.load %arg9[%c6_42, %c0_43] : memref<8x128xf32, #tpu.memory_space<vmem>>, vector<1x128xf32>
    %76 = vector.broadcast %74 : vector<128x1xf32> to vector<128x128xf32>
    %77 = vector.broadcast %75 : vector<1x128xf32> to vector<128x128xf32>
    %78 = arith.addf %76, %77 : vector<128x128xf32>
    %79 = math.tanh %78 : vector<128x128xf32>
    %80 = vector.broadcast %73 : f32 to vector<128x128xf32>
    %81 = arith.mulf %80, %79 : vector<128x128xf32>
    %82 = arith.addf %72, %81 : vector<128x128xf32>
    %c7 = arith.constant 7 : index
    %83 = memref.load %arg5[%c7] : memref<8xf32, #tpu.memory_space<smem>>
    %c0_44 = arith.constant 0 : index
    %c7_45 = arith.constant 7 : index
    %84 = vector.load %arg8[%c0_44, %c7_45] : memref<128x8xf32, #tpu.memory_space<vmem>>, vector<128x1xf32>
    %c7_46 = arith.constant 7 : index
    %c0_47 = arith.constant 0 : index
    %85 = vector.load %arg9[%c7_46, %c0_47] : memref<8x128xf32, #tpu.memory_space<vmem>>, vector<1x128xf32>
    %86 = vector.broadcast %84 : vector<128x1xf32> to vector<128x128xf32>
    %87 = vector.broadcast %85 : vector<1x128xf32> to vector<128x128xf32>
    %88 = arith.addf %86, %87 : vector<128x128xf32>
    %89 = math.tanh %88 : vector<128x128xf32>
    %90 = vector.broadcast %83 : f32 to vector<128x128xf32>
    %91 = arith.mulf %90, %89 : vector<128x128xf32>
    %92 = arith.addf %82, %91 : vector<128x128xf32>
    %cst_48 = arith.constant 5.000000e-01 : f32
    %93 = vector.broadcast %cst_48 : f32 to vector<128x128xf32>
    %94 = arith.mulf %93, %92 : vector<128x128xf32>
    %95 = math.tanh %94 : vector<128x128xf32>
    %96 = tpu.transpose %95, [1, 0] : vector<128x128xf32> -> vector<128x128xf32>
    %97 = arith.addf %95, %96 : vector<128x128xf32>
    %cst_49 = arith.constant 2.500000e-01 : f32
    %98 = vector.broadcast %cst_49 : f32 to vector<128x128xf32>
    %99 = arith.mulf %98, %97 : vector<128x128xf32>
    %cst_50 = arith.constant 5.000000e-01 : f32
    %100 = vector.broadcast %cst_50 : f32 to vector<128x128xf32>
    %101 = arith.addf %99, %100 : vector<128x128xf32>
    %c0_51 = arith.constant 0 : index
    %c0_52 = arith.constant 0 : index
    %102 = vector.load %arg7[%c0_51, %c0_52] : memref<128x128xf32, #tpu.memory_space<vmem>>, vector<128x128xf32>
    tpu.vector_store %arg7[%c0_51, %c0_52], %101 {strides = array<i32>} : memref<128x128xf32, #tpu.memory_space<vmem>>, vector<128x128xf32>,
    return
  }
}

</mosaic_0001>

<llo_original>
// kernel: tpu_custom_call.1
$region0: #{tpu_custom_call.1}
  #allocation0 [shape = 'u32[]', space=smem, size = 0x4, offset = 0x4, fixed_abs, tag = 'smem constant byte address 0x4 - core index']
  #allocation1 [shape = 'u32[72,128]{1,0:T(1,128)}', space=vmem, size = 0x9000, scoped, tag = 'internal scratch']
  #allocation2 [shape = 'f32[128,8]{1,0:T(8,128)}', space=vmem, size = 0x10000, scoped, tag = 'scratch operand']
  #allocation3 [shape = 'f32[8,128]{1,0:T(8,128)}', space=vmem, size = 0x1000, scoped, tag = 'scratch operand']
  #allocation4 [shape = 'f32[1]{0:T(128)S(6)}', space=smem, size = 0x200, scoped, tag = 'scoped memory for tpu_custom_call.1']
  %s0 = inlined_call_operand.vmem [shape: f32[128,16], index: 0, kind: input, shape index: {}]
  %s1 = inlined_call_operand.vmem [shape: f32[16,128], index: 1, kind: input, shape index: {}]
  %s2 = inlined_call_operand.vmem [shape: f32[16,8], index: 2, kind: input, shape index: {}]
  %s3 = inlined_call_operand.vmem [shape: f32[8,16], index: 3, kind: input, shape index: {}]
  %s4 = inlined_call_operand.vmem [shape: f32[1,8], index: 4, kind: input, shape index: {}]
  %s5 = inlined_call_operand.vmem [shape: f32[8], index: 5, kind: input, shape index: {}]
  %s6 = inlined_call_operand.<no memory space> [shape: f32[1], index: 6, kind: input, shape index: {}]
  %s7 = inlined_call_operand.hbm [shape: f32[128,128], index: 7, kind: output, shape index: {}]
  %s8 = sld [smem:[#allocation0]]
  $region42: #{tpu_custom_call.1} parent=0
    _
  %s10 = ssub.s32 1, %s8
  %s11 = scalar_select 0, %s10, %s8
  %12 = sst [smem:[#allocation4]] %s6
  $region1: #{tpu_custom_call.1} parent=0
    #allocation5 [shape = 'u8[512]{0}', space=smem, size = 0x200, scoped, tag = 'input window, operand 5, single buffered']
    #allocation6 [shape = 's32[1]{0}', space=sflag, size = 0x4, scoped, tag = 'scoped memory for tpu_custom_call.1']
    #allocation7 [shape = 's32[1]{0}', space=sflag, size = 0x4, scoped, tag = 'scoped memory for tpu_custom_call.1']
    #allocation8 [shape = 'u8[65536]{0}', space=vmem, size = 0x10000, scoped, tag = 'output window, operand 0, single buffered']
    %13 = vsyncpa [#allocation7], 0
    %14 = vsyncpa [#allocation6], 0
    // Predicated region
    $region2: #{tpu_custom_call.1} parent=1 // pred_check
      _
    $region3: #{tpu_custom_call.1} parent=1 // pred_check_branch
      %16 = sbr.rel (0) target = $region5
    $region4: #{tpu_custom_call.1} parent=1 // pred_region
      _
    $region5: #{tpu_custom_call.1} parent=1 // pred_fallthru
      _
    // Predicated region
    $region6: #{tpu_custom_call.1} parent=1 // pred_check
      _
    $region7: #{tpu_custom_call.1} parent=1 // pred_check_branch
      %18 = sbr.rel (0) target = $region9
    $region8: #{tpu_custom_call.1} parent=1 // pred_region
      _
    $region9: #{tpu_custom_call.1} parent=1 // pred_fallthru
      _
    // Predicated region
    $region10: #{tpu_custom_call.1} parent=1 // pred_check
      _
    $region11: #{tpu_custom_call.1} parent=1 // pred_check_branch
      %20 = sbr.rel (0) target = $region13
    $region12: #{tpu_custom_call.1} parent=1 // pred_region
      _
    $region13: #{tpu_custom_call.1} parent=1 // pred_fallthru
      _
    // Predicated region
    $region14: #{tpu_custom_call.1} parent=1 // pred_check
      _
    $region15: #{tpu_custom_call.1} parent=1 // pred_check_branch
      %22 = sbr.rel (0) target = $region17
    $region16: #{tpu_custom_call.1} parent=1 // pred_region
      _
    $region17: #{tpu_custom_call.1} parent=1 // pred_fallthru
      _
    // Predicated region
    $region18: #{tpu_custom_call.1} parent=1 // pred_check
      _
    $region19: #{tpu_custom_call.1} parent=1 // pred_check_branch
      %24 = sbr.rel (0) target = $region21
    $region20: #{tpu_custom_call.1} parent=1 // pred_region
      _
    $region21: #{tpu_custom_call.1} parent=1 // pred_fallthru
      _
    // Predicated region
    $region22: #{tpu_custom_call.1} parent=1 // pred_check
      _
    $region23: #{tpu_custom_call.1} parent=1 // pred_check_branch
      %26 = sbr.rel (0) target = $region25
    $region24: #{tpu_custom_call.1} parent=1 // pred_region
      %28 = vsyncadd [#allocation7], 0
      %s30 = sshll.u32 %s5, 4
      %s31 = int_to_ptr.vmem [resolvable:$true] %s30
      %33 = dma.vmem_to_smem %s31, 16, [#allocation5], [#allocation7]
    $region25: #{tpu_custom_call.1} parent=1 // pred_fallthru
      _
    // Predicated region
    $region26: #{tpu_custom_call.1} parent=1 // pred_check
      _
    $region27: #{tpu_custom_call.1} parent=1 // pred_check_branch
      %35 = sbr.rel (0) target = $region29
    $region28: #{tpu_custom_call.1} parent=1 // pred_region
      _
    $region29: #{tpu_custom_call.1} parent=1 // pred_fallthru
      _
    // Predicated region
    $region30: #{tpu_custom_call.1} parent=1 // pred_check
      _
    $region31: #{tpu_custom_call.1} parent=1 // pred_check_branch
      %37 = sbr.rel (0) target = $region33
    $region32: #{tpu_custom_call.1} parent=1 // pred_region
      %39 = dma.done [#allocation7], 16
    $region33: #{tpu_custom_call.1} parent=1 // pred_fallthru
      _
    %40 = sfence
    %v41 = vld [vmem:[%s0] sm:$0xff]
    %v42 = vld [vmem:[%s0 + $0x8] sm:$0xff]
    %v43 = vld [vmem:[%s0 + $0x10] sm:$0xff]
    %v44 = vld [vmem:[%s0 + $0x18] sm:$0xff]
    %v45 = vld [vmem:[%s0 + $0x20] sm:$0xff]
    %v46 = vld [vmem:[%s0 + $0x28] sm:$0xff]
    %v47 = vld [vmem:[%s0 + $0x30] sm:$0xff]
    %v48 = vld [vmem:[%s0 + $0x38] sm:$0xff]
    %v49 = vld [vmem:[%s0 + $0x40] sm:$0xff]
    %v50 = vld [vmem:[%s0 + $0x48] sm:$0xff]
    %v51 = vld [vmem:[%s0 + $0x50] sm:$0xff]
    %v52 = vld [vmem:[%s0 + $0x58] sm:$0xff]
    %v53 = vld [vmem:[%s0 + $0x60] sm:$0xff]
    %v54 = vld [vmem:[%s0 + $0x68] sm:$0xff]
    %v55 = vld [vmem:[%s0 + $0x70] sm:$0xff]
    %v56 = vld [vmem:[%s0 + $0x78] sm:$0xff]
    %v57 = vld [vmem:[%s2] sm:$0xff]
    %v58 = vld [vmem:[%s2 + $0x8] sm:$0xff]
    %v59 = vld [vmem:[%s4] sm:$0x1]
    %v61 = vperm.slane %v59, 0
    %vm63 = vcmask 130048
    %v65 = vsel %vm63, %v41, 0
    %v68 = vsel %vm63, %v42, 0
    %v71 = vsel %vm63, %v43, 0
    %v74 = vsel %vm63, %v44, 0
    %v77 = vsel %vm63, %v45, 0
    %v80 = vsel %vm63, %v46, 0
    %v83 = vsel %vm63, %v47, 0
    %v86 = vsel %vm63, %v48, 0
    %v89 = vsel %vm63, %v49, 0
    %v92 = vsel %vm63, %v50, 0
    %v95 = vsel %vm63, %v51, 0
    %v98 = vsel %vm63, %v52, 0
    %v101 = vsel %vm63, %v53, 0
    %v104 = vsel %vm63, %v54, 0
    %v107 = vsel %vm63, %v55, 0
    %v110 = vsel %vm63, %v56, 0
    %112 = vmatpush.msra.mxu0 0.0
    %113 = vmatpush.msra.mxu0 0.0
    %114 = vmatpush.msra.mxu0 0.0
    %115 = vmatpush.msra.mxu0 0.0
    %116 = vmatpush.msra.mxu0 0.0
    %117 = vmatpush.msra.mxu0 0.0
    %118 = vmatpush.msra.mxu0 0.0
    %119 = vmatpush.msra.mxu0 0.0
    %120 = vmatpush.msra.mxu0 0.0
    %121 = vmatpush.msra.mxu0 0.0
    %122 = vmatpush.msra.mxu0 0.0
    %123 = vmatpush.msra.mxu0 0.0
    %124 = vmatpush.msra.mxu0 0.0
    %125 = vmatpush.msra.mxu0 0.0
    %126 = vmatpush.msra.mxu0 %v58
    %127 = vmatpush.msra.mxu0 %v57
    %128 = vmatmul.f32.gmra.mxu0 %v65
    %v129 = vpop.f32.mrf.mxu0
    %v130 = vadd.f32 %v61, %v129
    %131 = vmatmul.f32.gmra.mxu0 %v68
    %v132 = vpop.f32.mrf.mxu0
    %v133 = vadd.f32 %v61, %v132
    %134 = vmatmul.f32.gmra.mxu0 %v71
    %v135 = vpop.f32.mrf.mxu0
    %v136 = vadd.f32 %v61, %v135
    %137 = vmatmul.f32.gmra.mxu0 %v74
    %v138 = vpop.f32.mrf.mxu0
    %v139 = vadd.f32 %v61, %v138
    %140 = vmatmul.f32.gmra.mxu0 %v77
    %v141 = vpop.f32.mrf.mxu0
    %v142 = vadd.f32 %v61, %v141
    %143 = vmatmul.f32.gmra.mxu0 %v80
    %v144 = vpop.f32.mrf.mxu0
    %v145 = vadd.f32 %v61, %v144
    %146 = vmatmul.f32.gmra.mxu0 %v83
    %v147 = vpop.f32.mrf.mxu0
    %v148 = vadd.f32 %v61, %v147
    %149 = vmatmul.f32.gmra.mxu0 %v86
    %v150 = vpop.f32.mrf.mxu0
    %v151 = vadd.f32 %v61, %v150
    %152 = vmatmul.f32.gmra.mxu0 %v89
    %v153 = vpop.f32.mrf.mxu0
    %v154 = vadd.f32 %v61, %v153
    %155 = vmatmul.f32.gmra.mxu0 %v92
    %v156 = vpop.f32.mrf.mxu0
    %v157 = vadd.f32 %v61, %v156
    %158 = vmatmul.f32.gmra.mxu0 %v95
    %v159 = vpop.f32.mrf.mxu0
    %v160 = vadd.f32 %v61, %v159
    %161 = vmatmul.f32.gmra.mxu0 %v98
    %v162 = vpop.f32.mrf.mxu0
    %v163 = vadd.f32 %v61, %v162
    %164 = vmatmul.f32.gmra.mxu0 %v101
    %v165 = vpop.f32.mrf.mxu0
    %v166 = vadd.f32 %v61, %v165
    %167 = vmatmul.f32.gmra.mxu0 %v104
    %v168 = vpop.f32.mrf.mxu0
    %v169 = vadd.f32 %v61, %v168
    %170 = vmatmul.f32.gmra.mxu0 %v107
    %v171 = vpop.f32.mrf.mxu0
    %v172 = vadd.f32 %v61, %v171
    %173 = vmatmul.f32.gmra.mxu0 %v110
    %v174 = vpop.f32.mrf.mxu0
    %v175 = vadd.f32 %v61, %v174
    %176 = vdwg.mxu0
    %vm177 = vcmask 64512
    %178 = vst.msk [vmem:[#allocation2] sm:$0xff] %vm177, %v130
    %179 = vst.msk [vmem:[#allocation2 + $0x8] sm:$0xff] %vm177, %v133
    %180 = vst.msk [vmem:[#allocation2 + $0x10] sm:$0xff] %vm177, %v136
    %181 = vst.msk [vmem:[#allocation2 + $0x18] sm:$0xff] %vm177, %v139
    %182 = vst.msk [vmem:[#allocation2 + $0x20] sm:$0xff] %vm177, %v142
    %183 = vst.msk [vmem:[#allocation2 + $0x28] sm:$0xff] %vm177, %v145
    %184 = vst.msk [vmem:[#allocation2 + $0x30] sm:$0xff] %vm177, %v148
    %185 = vst.msk [vmem:[#allocation2 + $0x38] sm:$0xff] %vm177, %v151
    %186 = vst.msk [vmem:[#allocation2 + $0x40] sm:$0xff] %vm177, %v154
    %187 = vst.msk [vmem:[#allocation2 + $0x48] sm:$0xff] %vm177, %v157
    %188 = vst.msk [vmem:[#allocation2 + $0x50] sm:$0xff] %vm177, %v160
    %189 = vst.msk [vmem:[#allocation2 + $0x58] sm:$0xff] %vm177, %v163
    %190 = vst.msk [vmem:[#allocation2 + $0x60] sm:$0xff] %vm177, %v166
    %191 = vst.msk [vmem:[#allocation2 + $0x68] sm:$0xff] %vm177, %v169
    %192 = vst.msk [vmem:[#allocation2 + $0x70] sm:$0xff] %vm177, %v172
    %193 = vst.msk [vmem:[#allocation2 + $0x78] sm:$0xff] %vm177, %v175
    %v194 = vld [vmem:[%s3] sm:$0xff]
    %v195 = vld [vmem:[%s1] sm:$0xff]
    %v196 = vld [vmem:[%s1 + $0x8] sm:$0xff]
    %v198 = vsel %vm63, %v194, 0
    %200 = vmatpush.msra.mxu0 0.0
    %201 = vmatpush.msra.mxu0 0.0
    %202 = vmatpush.msra.mxu0 0.0
    %203 = vmatpush.msra.mxu0 0.0
    %204 = vmatpush.msra.mxu0 0.0
    %205 = vmatpush.msra.mxu0 0.0
    %206 = vmatpush.msra.mxu0 0.0
    %207 = vmatpush.msra.mxu0 0.0
    %208 = vmatpush.msra.mxu0 0.0
    %209 = vmatpush.msra.mxu0 0.0
    %210 = vmatpush.msra.mxu0 0.0
    %211 = vmatpush.msra.mxu0 0.0
    %212 = vmatpush.msra.mxu0 0.0
    %213 = vmatpush.msra.mxu0 0.0
    %214 = vmatpush.msra.mxu0 %v196
    %215 = vmatpush.msra.mxu0 %v195
    %216 = vmatmul.f32.gmra.mxu0 %v198
    %v217 = vpop.f32.mrf.mxu0
    %v218 = vadd.f32 0.0, %v217
    %219 = vdwg.mxu0
    %220 = vst [vmem:[#allocation3] sm:$0xff] %v218
    %s221 = sld [smem:[#allocation4]]
    %v222 = vstv %s221
    %s223 = sld [smem:[#allocation5]]
    %v224 = vld [vmem:[#allocation2] sm:$0xff]
    %v225 = vld [vmem:[#allocation2 + $0x8] sm:$0xff]
    %v226 = vld [vmem:[#allocation2 + $0x10] sm:$0xff]
    %v227 = vld [vmem:[#allocation2 + $0x18] sm:$0xff]
    %v228 = vld [vmem:[#allocation2 + $0x20] sm:$0xff]
    %v229 = vld [vmem:[#allocation2 + $0x28] sm:$0xff]
    %v230 = vld [vmem:[#allocation2 + $0x30] sm:$0xff]
    %v231 = vld [vmem:[#allocation2 + $0x38] sm:$0xff]
    %v232 = vld [vmem:[#allocation2 + $0x40] sm:$0xff]
    %v233 = vld [vmem:[#allocation2 + $0x48] sm:$0xff]
    %v234 = vld [vmem:[#allocation2 + $0x50] sm:$0xff]
    %v235 = vld [vmem:[#allocation2 + $0x58] sm:$0xff]
    %v236 = vld [vmem:[#allocation2 + $0x60] sm:$0xff]
    %v237 = vld [vmem:[#allocation2 + $0x68] sm:$0xff]
    %v238 = vld [vmem:[#allocation2 + $0x70] sm:$0xff]
    %v239 = vld [vmem:[#allocation2 + $0x78] sm:$0xff]
    %v240 = vld [vmem:[#allocation3] sm:$0x1]
    %242 = vset.pattern.permute.xlu0 0
    %243 = vperm.xlu0 %242, %v224
    %v244 = vpop.permute.xlu0 %243
    %247 = vset.pattern.permute.xlu0 0
    %248 = vperm.xlu0 %247, %v225
    %v249 = vpop.permute.xlu0 %248
    %252 = vset.pattern.permute.xlu0 0
    %253 = vperm.xlu0 %252, %v226
    %v254 = vpop.permute.xlu0 %253
    %257 = vset.pattern.permute.xlu0 0
    %258 = vperm.xlu0 %257, %v227
    %v259 = vpop.permute.xlu0 %258
    %262 = vset.pattern.permute.xlu0 0
    %263 = vperm.xlu0 %262, %v228
    %v264 = vpop.permute.xlu0 %263
    %267 = vset.pattern.permute.xlu0 0
    %268 = vperm.xlu0 %267, %v229
    %v269 = vpop.permute.xlu0 %268
    %272 = vset.pattern.permute.xlu0 0
    %273 = vperm.xlu0 %272, %v230
    %v274 = vpop.permute.xlu0 %273
    %277 = vset.pattern.permute.xlu0 0
    %278 = vperm.xlu0 %277, %v231
    %v279 = vpop.permute.xlu0 %278
    %282 = vset.pattern.permute.xlu0 0
    %283 = vperm.xlu0 %282, %v232
    %v284 = vpop.permute.xlu0 %283
    %287 = vset.pattern.permute.xlu0 0
    %288 = vperm.xlu0 %287, %v233
    %v289 = vpop.permute.xlu0 %288
    %292 = vset.pattern.permute.xlu0 0
    %293 = vperm.xlu0 %292, %v234
    %v294 = vpop.permute.xlu0 %293
    %297 = vset.pattern.permute.xlu0 0
    %298 = vperm.xlu0 %297, %v235
    %v299 = vpop.permute.xlu0 %298
    %302 = vset.pattern.permute.xlu0 0
    %303 = vperm.xlu0 %302, %v236
    %v304 = vpop.permute.xlu0 %303
    %307 = vset.pattern.permute.xlu0 0
    %308 = vperm.xlu0 %307, %v237
    %v309 = vpop.permute.xlu0 %308
    %312 = vset.pattern.permute.xlu0 0
    %313 = vperm.xlu0 %312, %v238
    %v314 = vpop.permute.xlu0 %313
    %317 = vset.pattern.permute.xlu0 0
    %318 = vperm.xlu0 %317, %v239
    %v319 = vpop.permute.xlu0 %318
    %v321 = vperm.slane %v240, 0
    %v322 = vadd.f32 %v244, %v321
    %v323 = vadd.f32 %v249, %v321
    %v324 = vadd.f32 %v254, %v321
    %v325 = vadd.f32 %v259, %v321
    %v326 = vadd.f32 %v264, %v321
    %v327 = vadd.f32 %v269, %v321
    %v328 = vadd.f32 %v274, %v321
    %v329 = vadd.f32 %v279, %v321
    %v330 = vadd.f32 %v284, %v321
    %v331 = vadd.f32 %v289, %v321
    %v332 = vadd.f32 %v294, %v321
    %v333 = vadd.f32 %v299, %v321
    %v334 = vadd.f32 %v304, %v321
    %v335 = vadd.f32 %v309, %v321
    %v336 = vadd.f32 %v314, %v321
    %v337 = vadd.f32 %v319, %v321
    %v338 = vtanh.pop %v322
    %v339 = vtanh.pop %v323
    %v340 = vtanh.pop %v324
    %v341 = vtanh.pop %v325
    %v342 = vtanh.pop %v326
    %v343 = vtanh.pop %v327
    %v344 = vtanh.pop %v328
    %v345 = vtanh.pop %v329
    %v346 = vtanh.pop %v330
    %v347 = vtanh.pop %v331
    %v348 = vtanh.pop %v332
    %v349 = vtanh.pop %v333
    %v350 = vtanh.pop %v334
    %v351 = vtanh.pop %v335
    %v352 = vtanh.pop %v336
    %v353 = vtanh.pop %v337
    %v354 = vstv %s223
    %v355 = vmul.f32 %v354, %v338
    %v356 = vmul.f32 %v354, %v339
    %v357 = vmul.f32 %v354, %v340
    %v358 = vmul.f32 %v354, %v341
    %v359 = vmul.f32 %v354, %v342
    %v360 = vmul.f32 %v354, %v343
    %v361 = vmul.f32 %v354, %v344
    %v362 = vmul.f32 %v354, %v345
    %v363 = vmul.f32 %v354, %v346
    %v364 = vmul.f32 %v354, %v347
    %v365 = vmul.f32 %v354, %v348
    %v366 = vmul.f32 %v354, %v349
    %v367 = vmul.f32 %v354, %v350
    %v368 = vmul.f32 %v354, %v351
    %v369 = vmul.f32 %v354, %v352
    %v370 = vmul.f32 %v354, %v353
    %v371 = vadd.f32 %v222, %v355
    %v372 = vadd.f32 %v222, %v356
    %v373 = vadd.f32 %v222, %v357
    %v374 = vadd.f32 %v222, %v358
    %v375 = vadd.f32 %v222, %v359
    %v376 = vadd.f32 %v222, %v360
    %v377 = vadd.f32 %v222, %v361
    %v378 = vadd.f32 %v222, %v362
    %v379 = vadd.f32 %v222, %v363
    %v380 = vadd.f32 %v222, %v364
    %v381 = vadd.f32 %v222, %v365
    %v382 = vadd.f32 %v222, %v366
    %v383 = vadd.f32 %v222, %v367
    %v384 = vadd.f32 %v222, %v368
    %v385 = vadd.f32 %v222, %v369
    %v386 = vadd.f32 %v222, %v370
    %s387 = sld [smem:[#allocation5 + $0x1]]
    %v388 = vld [vmem:[#allocation3 + $0x1] sm:$0x1]
    %389 = vset.pattern.permute.xlu0 1
    %390 = vperm.xlu0 %389, %v224
    %v391 = vpop.permute.xlu0 %390
    %393 = vset.pattern.permute.xlu0 1
    %394 = vperm.xlu0 %393, %v225
    %v395 = vpop.permute.xlu0 %394
    %397 = vset.pattern.permute.xlu0 1
    %398 = vperm.xlu0 %397, %v226
    %v399 = vpop.permute.xlu0 %398
    %401 = vset.pattern.permute.xlu0 1
    %402 = vperm.xlu0 %401, %v227
    %v403 = vpop.permute.xlu0 %402
    %405 = vset.pattern.permute.xlu0 1
    %406 = vperm.xlu0 %405, %v228
    %v407 = vpop.permute.xlu0 %406
    %409 = vset.pattern.permute.xlu0 1
    %410 = vperm.xlu0 %409, %v229
    %v411 = vpop.permute.xlu0 %410
    %413 = vset.pattern.permute.xlu0 1
    %414 = vperm.xlu0 %413, %v230
    %v415 = vpop.permute.xlu0 %414
    %417 = vset.pattern.permute.xlu0 1
    %418 = vperm.xlu0 %417, %v231
    %v419 = vpop.permute.xlu0 %418
    %421 = vset.pattern.permute.xlu0 1
    %422 = vperm.xlu0 %421, %v232
    %v423 = vpop.permute.xlu0 %422
    %425 = vset.pattern.permute.xlu0 1
    %426 = vperm.xlu0 %425, %v233
    %v427 = vpop.permute.xlu0 %426
    %429 = vset.pattern.permute.xlu0 1
    %430 = vperm.xlu0 %429, %v234
    %v431 = vpop.permute.xlu0 %430
    %433 = vset.pattern.permute.xlu0 1
    %434 = vperm.xlu0 %433, %v235
    %v435 = vpop.permute.xlu0 %434
    %437 = vset.pattern.permute.xlu0 1
    %438 = vperm.xlu0 %437, %v236
    %v439 = vpop.permute.xlu0 %438
    %441 = vset.pattern.permute.xlu0 1
    %442 = vperm.xlu0 %441, %v237
    %v443 = vpop.permute.xlu0 %442
    %445 = vset.pattern.permute.xlu0 1
    %446 = vperm.xlu0 %445, %v238
    %v447 = vpop.permute.xlu0 %446
    %449 = vset.pattern.permute.xlu0 1
    %450 = vperm.xlu0 %449, %v239
    %v451 = vpop.permute.xlu0 %450
    %v453 = vperm.slane %v388, 0
    %v454 = vadd.f32 %v391, %v453
    %v455 = vadd.f32 %v395, %v453
    %v456 = vadd.f32 %v399, %v453
    %v457 = vadd.f32 %v403, %v453
    %v458 = vadd.f32 %v407, %v453
    %v459 = vadd.f32 %v411, %v453
    %v460 = vadd.f32 %v415, %v453
    %v461 = vadd.f32 %v419, %v453
    %v462 = vadd.f32 %v423, %v453
    %v463 = vadd.f32 %v427, %v453
    %v464 = vadd.f32 %v431, %v453
    %v465 = vadd.f32 %v435, %v453
    %v466 = vadd.f32 %v439, %v453
    %v467 = vadd.f32 %v443, %v453
    %v468 = vadd.f32 %v447, %v453
    %v469 = vadd.f32 %v451, %v453
    %v470 = vtanh.pop %v454
    %v471 = vtanh.pop %v455
    %v472 = vtanh.pop %v456
    %v473 = vtanh.pop %v457
    %v474 = vtanh.pop %v458
    %v475 = vtanh.pop %v459
    %v476 = vtanh.pop %v460
    %v477 = vtanh.pop %v461
    %v478 = vtanh.pop %v462
    %v479 = vtanh.pop %v463
    %v480 = vtanh.pop %v464
    %v481 = vtanh.pop %v465
    %v482 = vtanh.pop %v466
    %v483 = vtanh.pop %v467
    %v484 = vtanh.pop %v468
    %v485 = vtanh.pop %v469
    %v486 = vstv %s387
    %v487 = vmul.f32 %v486, %v470
    %v488 = vmul.f32 %v486, %v471
    %v489 = vmul.f32 %v486, %v472
    %v490 = vmul.f32 %v486, %v473
    %v491 = vmul.f32 %v486, %v474
    %v492 = vmul.f32 %v486, %v475
    %v493 = vmul.f32 %v486, %v476
    %v494 = vmul.f32 %v486, %v477
    %v495 = vmul.f32 %v486, %v478
    %v496 = vmul.f32 %v486, %v479
    %v497 = vmul.f32 %v486, %v480
    %v498 = vmul.f32 %v486, %v481
    %v499 = vmul.f32 %v486, %v482
    %v500 = vmul.f32 %v486, %v483
    %v501 = vmul.f32 %v486, %v484
    %v502 = vmul.f32 %v486, %v485
    %v503 = vadd.f32 %v371, %v487
    %v504 = vadd.f32 %v372, %v488
    %v505 = vadd.f32 %v373, %v489
    %v506 = vadd.f32 %v374, %v490
    %v507 = vadd.f32 %v375, %v491
    %v508 = vadd.f32 %v376, %v492
    %v509 = vadd.f32 %v377, %v493
    %v510 = vadd.f32 %v378, %v494
    %v511 = vadd.f32 %v379, %v495
    %v512 = vadd.f32 %v380, %v496
    %v513 = vadd.f32 %v381, %v497
    %v514 = vadd.f32 %v382, %v498
    %v515 = vadd.f32 %v383, %v499
    %v516 = vadd.f32 %v384, %v500
    %v517 = vadd.f32 %v385, %v501
    %v518 = vadd.f32 %v386, %v502
    %s519 = sld [smem:[#allocation5 + $0x2]]
    %v520 = vld [vmem:[#allocation3 + $0x2] sm:$0x1]
    %521 = vset.pattern.permute.xlu0 2
    %522 = vperm.xlu0 %521, %v224
    %v523 = vpop.permute.xlu0 %522
    %525 = vset.pattern.permute.xlu0 2
    %526 = vperm.xlu0 %525, %v225
    %v527 = vpop.permute.xlu0 %526
    %529 = vset.pattern.permute.xlu0 2
    %530 = vperm.xlu0 %529, %v226
    %v531 = vpop.permute.xlu0 %530
    %533 = vset.pattern.permute.xlu0 2
    %534 = vperm.xlu0 %533, %v227
    %v535 = vpop.permute.xlu0 %534
    %537 = vset.pattern.permute.xlu0 2
    %538 = vperm.xlu0 %537, %v228
    %v539 = vpop.permute.xlu0 %538
    %541 = vset.pattern.permute.xlu0 2
    %542 = vperm.xlu0 %541, %v229
    %v543 = vpop.permute.xlu0 %542
    %545 = vset.pattern.permute.xlu0 2
    %546 = vperm.xlu0 %545, %v230
    %v547 = vpop.permute.xlu0 %546
    %549 = vset.pattern.permute.xlu0 2
    %550 = vperm.xlu0 %549, %v231
    %v551 = vpop.permute.xlu0 %550
    %553 = vset.pattern.permute.xlu0 2
    %554 = vperm.xlu0 %553, %v232
    %v555 = vpop.permute.xlu0 %554
    %557 = vset.pattern.permute.xlu0 2
    %558 = vperm.xlu0 %557, %v233
    %v559 = vpop.permute.xlu0 %558
    %561 = vset.pattern.permute.xlu0 2
    %562 = vperm.xlu0 %561, %v234
    %v563 = vpop.permute.xlu0 %562
    %565 = vset.pattern.permute.xlu0 2
    %566 = vperm.xlu0 %565, %v235
    %v567 = vpop.permute.xlu0 %566
    %569 = vset.pattern.permute.xlu0 2
    %570 = vperm.xlu0 %569, %v236
    %v571 = vpop.permute.xlu0 %570
    %573 = vset.pattern.permute.xlu0 2
    %574 = vperm.xlu0 %573, %v237
    %v575 = vpop.permute.xlu0 %574
    %577 = vset.pattern.permute.xlu0 2
    %578 = vperm.xlu0 %577, %v238
    %v579 = vpop.permute.xlu0 %578
    %581 = vset.pattern.permute.xlu0 2
    %582 = vperm.xlu0 %581, %v239
    %v583 = vpop.permute.xlu0 %582
    %v585 = vperm.slane %v520, 0
    %v586 = vadd.f32 %v523, %v585
    %v587 = vadd.f32 %v527, %v585
    %v588 = vadd.f32 %v531, %v585
    %v589 = vadd.f32 %v535, %v585
    %v590 = vadd.f32 %v539, %v585
    %v591 = vadd.f32 %v543, %v585
    %v592 = vadd.f32 %v547, %v585
    %v593 = vadd.f32 %v551, %v585
    %v594 = vadd.f32 %v555, %v585
    %v595 = vadd.f32 %v559, %v585
    %v596 = vadd.f32 %v563, %v585
    %v597 = vadd.f32 %v567, %v585
    %v598 = vadd.f32 %v571, %v585
    %v599 = vadd.f32 %v575, %v585
    %v600 = vadd.f32 %v579, %v585
    %v601 = vadd.f32 %v583, %v585
    %v602 = vtanh.pop %v586
    %v603 = vtanh.pop %v587
    %v604 = vtanh.pop %v588
    %v605 = vtanh.pop %v589
    %v606 = vtanh.pop %v590
    %v607 = vtanh.pop %v591
    %v608 = vtanh.pop %v592
    %v609 = vtanh.pop %v593
    %v610 = vtanh.pop %v594
    %v611 = vtanh.pop %v595
    %v612 = vtanh.pop %v596
    %v613 = vtanh.pop %v597
    %v614 = vtanh.pop %v598
    %v615 = vtanh.pop %v599
    %v616 = vtanh.pop %v600
    %v617 = vtanh.pop %v601
    %v618 = vstv %s519
    %v619 = vmul.f32 %v618, %v602
    %v620 = vmul.f32 %v618, %v603
    %v621 = vmul.f32 %v618, %v604
    %v622 = vmul.f32 %v618, %v605
    %v623 = vmul.f32 %v618, %v606
    %v624 = vmul.f32 %v618, %v607
    %v625 = vmul.f32 %v618, %v608
    %v626 = vmul.f32 %v618, %v609
    %v627 = vmul.f32 %v618, %v610
    %v628 = vmul.f32 %v618, %v611
    %v629 = vmul.f32 %v618, %v612
    %v630 = vmul.f32 %v618, %v613
    %v631 = vmul.f32 %v618, %v614
    %v632 = vmul.f32 %v618, %v615
    %v633 = vmul.f32 %v618, %v616
    %v634 = vmul.f32 %v618, %v617
    %v635 = vadd.f32 %v503, %v619
    %v636 = vadd.f32 %v504, %v620
    %v637 = vadd.f32 %v505, %v621
    %v638 = vadd.f32 %v506, %v622
    %v639 = vadd.f32 %v507, %v623
    %v640 = vadd.f32 %v508, %v624
    %v641 = vadd.f32 %v509, %v625
    %v642 = vadd.f32 %v510, %v626
    %v643 = vadd.f32 %v511, %v627
    %v644 = vadd.f32 %v512, %v628
    %v645 = vadd.f32 %v513, %v629
    %v646 = vadd.f32 %v514, %v630
    %v647 = vadd.f32 %v515, %v631
    %v648 = vadd.f32 %v516, %v632
    %v649 = vadd.f32 %v517, %v633
    %v650 = vadd.f32 %v518, %v634
    %s651 = sld [smem:[#allocation5 + $0x3]]
    %v652 = vld [vmem:[#allocation3 + $0x3] sm:$0x1]
    %653 = vset.pattern.permute.xlu0 3
    %654 = vperm.xlu0 %653, %v224
    %v655 = vpop.permute.xlu0 %654
    %657 = vset.pattern.permute.xlu0 3
    %658 = vperm.xlu0 %657, %v225
    %v659 = vpop.permute.xlu0 %658
    %661 = vset.pattern.permute.xlu0 3
    %662 = vperm.xlu0 %661, %v226
    %v663 = vpop.permute.xlu0 %662
    %665 = vset.pattern.permute.xlu0 3
    %666 = vperm.xlu0 %665, %v227
    %v667 = vpop.permute.xlu0 %666
    %669 = vset.pattern.permute.xlu0 3
    %670 = vperm.xlu0 %669, %v228
    %v671 = vpop.permute.xlu0 %670
    %673 = vset.pattern.permute.xlu0 3
    %674 = vperm.xlu0 %673, %v229
    %v675 = vpop.permute.xlu0 %674
    %677 = vset.pattern.permute.xlu0 3
    %678 = vperm.xlu0 %677, %v230
    %v679 = vpop.permute.xlu0 %678
    %681 = vset.pattern.permute.xlu0 3
    %682 = vperm.xlu0 %681, %v231
    %v683 = vpop.permute.xlu0 %682
    %685 = vset.pattern.permute.xlu0 3
    %686 = vperm.xlu0 %685, %v232
    %v687 = vpop.permute.xlu0 %686
    %689 = vset.pattern.permute.xlu0 3
    %690 = vperm.xlu0 %689, %v233
    %v691 = vpop.permute.xlu0 %690
    %693 = vset.pattern.permute.xlu0 3
    %694 = vperm.xlu0 %693, %v234
    %v695 = vpop.permute.xlu0 %694
    %697 = vset.pattern.permute.xlu0 3
    %698 = vperm.xlu0 %697, %v235
    %v699 = vpop.permute.xlu0 %698
    %701 = vset.pattern.permute.xlu0 3
    %702 = vperm.xlu0 %701, %v236
    %v703 = vpop.permute.xlu0 %702
    %705 = vset.pattern.permute.xlu0 3
    %706 = vperm.xlu0 %705, %v237
    %v707 = vpop.permute.xlu0 %706
    %709 = vset.pattern.permute.xlu0 3
    %710 = vperm.xlu0 %709, %v238
    %v711 = vpop.permute.xlu0 %710
    %713 = vset.pattern.permute.xlu0 3
    %714 = vperm.xlu0 %713, %v239
    %v715 = vpop.permute.xlu0 %714
    %v717 = vperm.slane %v652, 0
    %v718 = vadd.f32 %v655, %v717
    %v719 = vadd.f32 %v659, %v717
    %v720 = vadd.f32 %v663, %v717
    %v721 = vadd.f32 %v667, %v717
    %v722 = vadd.f32 %v671, %v717
    %v723 = vadd.f32 %v675, %v717
    %v724 = vadd.f32 %v679, %v717
    %v725 = vadd.f32 %v683, %v717
    %v726 = vadd.f32 %v687, %v717
    %v727 = vadd.f32 %v691, %v717
    %v728 = vadd.f32 %v695, %v717
    %v729 = vadd.f32 %v699, %v717
    %v730 = vadd.f32 %v703, %v717
    %v731 = vadd.f32 %v707, %v717
    %v732 = vadd.f32 %v711, %v717
    %v733 = vadd.f32 %v715, %v717
    %v734 = vtanh.pop %v718
    %v735 = vtanh.pop %v719
    %v736 = vtanh.pop %v720
    %v737 = vtanh.pop %v721
    %v738 = vtanh.pop %v722
    %v739 = vtanh.pop %v723
    %v740 = vtanh.pop %v724
    %v741 = vtanh.pop %v725
    %v742 = vtanh.pop %v726
    %v743 = vtanh.pop %v727
    %v744 = vtanh.pop %v728
    %v745 = vtanh.pop %v729
    %v746 = vtanh.pop %v730
    %v747 = vtanh.pop %v731
    %v748 = vtanh.pop %v732
    %v749 = vtanh.pop %v733
    %v750 = vstv %s651
    %v751 = vmul.f32 %v750, %v734
    %v752 = vmul.f32 %v750, %v735
    %v753 = vmul.f32 %v750, %v736
    %v754 = vmul.f32 %v750, %v737
    %v755 = vmul.f32 %v750, %v738
    %v756 = vmul.f32 %v750, %v739
    %v757 = vmul.f32 %v750, %v740
    %v758 = vmul.f32 %v750, %v741
    %v759 = vmul.f32 %v750, %v742
    %v760 = vmul.f32 %v750, %v743
    %v761 = vmul.f32 %v750, %v744
    %v762 = vmul.f32 %v750, %v745
    %v763 = vmul.f32 %v750, %v746
    %v764 = vmul.f32 %v750, %v747
    %v765 = vmul.f32 %v750, %v748
    %v766 = vmul.f32 %v750, %v749
    %v767 = vadd.f32 %v635, %v751
    %v768 = vadd.f32 %v636, %v752
    %v769 = vadd.f32 %v637, %v753
    %v770 = vadd.f32 %v638, %v754
    %v771 = vadd.f32 %v639, %v755
    %v772 = vadd.f32 %v640, %v756
    %v773 = vadd.f32 %v641, %v757
    %v774 = vadd.f32 %v642, %v758
    %v775 = vadd.f32 %v643, %v759
    %v776 = vadd.f32 %v644, %v760
    %v777 = vadd.f32 %v645, %v761
    %v778 = vadd.f32 %v646, %v762
    %v779 = vadd.f32 %v647, %v763
    %v780 = vadd.f32 %v648, %v764
    %v781 = vadd.f32 %v649, %v765
    %v782 = vadd.f32 %v650, %v766
    %s783 = sld [smem:[#allocation5 + $0x4]]
    %v784 = vld [vmem:[#allocation3 + $0x4] sm:$0x1]
    %785 = vset.pattern.permute.xlu0 4
    %786 = vperm.xlu0 %785, %v224
    %v787 = vpop.permute.xlu0 %786
    %789 = vset.pattern.permute.xlu0 4
    %790 = vperm.xlu0 %789, %v225
    %v791 = vpop.permute.xlu0 %790
    %793 = vset.pattern.permute.xlu0 4
    %794 = vperm.xlu0 %793, %v226
    %v795 = vpop.permute.xlu0 %794
    %797 = vset.pattern.permute.xlu0 4
    %798 = vperm.xlu0 %797, %v227
    %v799 = vpop.permute.xlu0 %798
    %801 = vset.pattern.permute.xlu0 4
    %802 = vperm.xlu0 %801, %v228
    %v803 = vpop.permute.xlu0 %802
    %805 = vset.pattern.permute.xlu0 4
    %806 = vperm.xlu0 %805, %v229
    %v807 = vpop.permute.xlu0 %806
    %809 = vset.pattern.permute.xlu0 4
    %810 = vperm.xlu0 %809, %v230
    %v811 = vpop.permute.xlu0 %810
    %813 = vset.pattern.permute.xlu0 4
    %814 = vperm.xlu0 %813, %v231
    %v815 = vpop.permute.xlu0 %814
    %817 = vset.pattern.permute.xlu0 4
    %818 = vperm.xlu0 %817, %v232
    %v819 = vpop.permute.xlu0 %818
    %821 = vset.pattern.permute.xlu0 4
    %822 = vperm.xlu0 %821, %v233
    %v823 = vpop.permute.xlu0 %822
    %825 = vset.pattern.permute.xlu0 4
    %826 = vperm.xlu0 %825, %v234
    %v827 = vpop.permute.xlu0 %826
    %829 = vset.pattern.permute.xlu0 4
    %830 = vperm.xlu0 %829, %v235
    %v831 = vpop.permute.xlu0 %830
    %833 = vset.pattern.permute.xlu0 4
    %834 = vperm.xlu0 %833, %v236
    %v835 = vpop.permute.xlu0 %834
    %837 = vset.pattern.permute.xlu0 4
    %838 = vperm.xlu0 %837, %v237
    %v839 = vpop.permute.xlu0 %838
    %841 = vset.pattern.permute.xlu0 4
    %842 = vperm.xlu0 %841, %v238
    %v843 = vpop.permute.xlu0 %842
    %845 = vset.pattern.permute.xlu0 4
    %846 = vperm.xlu0 %845, %v239
    %v847 = vpop.permute.xlu0 %846
    %v849 = vperm.slane %v784, 0
    %v850 = vadd.f32 %v787, %v849
    %v851 = vadd.f32 %v791, %v849
    %v852 = vadd.f32 %v795, %v849
    %v853 = vadd.f32 %v799, %v849
    %v854 = vadd.f32 %v803, %v849
    %v855 = vadd.f32 %v807, %v849
    %v856 = vadd.f32 %v811, %v849
    %v857 = vadd.f32 %v815, %v849
    %v858 = vadd.f32 %v819, %v849
    %v859 = vadd.f32 %v823, %v849
    %v860 = vadd.f32 %v827, %v849
    %v861 = vadd.f32 %v831, %v849
    %v862 = vadd.f32 %v835, %v849
    %v863 = vadd.f32 %v839, %v849
    %v864 = vadd.f32 %v843, %v849
    %v865 = vadd.f32 %v847, %v849
    %v866 = vtanh.pop %v850
    %v867 = vtanh.pop %v851
    %v868 = vtanh.pop %v852
    %v869 = vtanh.pop %v853
    %v870 = vtanh.pop %v854
    %v871 = vtanh.pop %v855
    %v872 = vtanh.pop %v856
    %v873 = vtanh.pop %v857
    %v874 = vtanh.pop %v858
    %v875 = vtanh.pop %v859
    %v876 = vtanh.pop %v860
    %v877 = vtanh.pop %v861
    %v878 = vtanh.pop %v862
    %v879 = vtanh.pop %v863
    %v880 = vtanh.pop %v864
    %v881 = vtanh.pop %v865
    %v882 = vstv %s783
    %v883 = vmul.f32 %v882, %v866
    %v884 = vmul.f32 %v882, %v867
    %v885 = vmul.f32 %v882, %v868
    %v886 = vmul.f32 %v882, %v869
    %v887 = vmul.f32 %v882, %v870
    %v888 = vmul.f32 %v882, %v871
    %v889 = vmul.f32 %v882, %v872
    %v890 = vmul.f32 %v882, %v873
    %v891 = vmul.f32 %v882, %v874
    %v892 = vmul.f32 %v882, %v875
    %v893 = vmul.f32 %v882, %v876
    %v894 = vmul.f32 %v882, %v877
    %v895 = vmul.f32 %v882, %v878
    %v896 = vmul.f32 %v882, %v879
    %v897 = vmul.f32 %v882, %v880
    %v898 = vmul.f32 %v882, %v881
    %v899 = vadd.f32 %v767, %v883
    %v900 = vadd.f32 %v768, %v884
    %v901 = vadd.f32 %v769, %v885
    %v902 = vadd.f32 %v770, %v886
    %v903 = vadd.f32 %v771, %v887
    %v904 = vadd.f32 %v772, %v888
    %v905 = vadd.f32 %v773, %v889
    %v906 = vadd.f32 %v774, %v890
    %v907 = vadd.f32 %v775, %v891
    %v908 = vadd.f32 %v776, %v892
    %v909 = vadd.f32 %v777, %v893
    %v910 = vadd.f32 %v778, %v894
    %v911 = vadd.f32 %v779, %v895
    %v912 = vadd.f32 %v780, %v896
    %v913 = vadd.f32 %v781, %v897
    %v914 = vadd.f32 %v782, %v898
    %s915 = sld [smem:[#allocation5 + $0x5]]
    %v916 = vld [vmem:[#allocation3 + $0x5] sm:$0x1]
    %917 = vset.pattern.permute.xlu0 5
    %918 = vperm.xlu0 %917, %v224
    %v919 = vpop.permute.xlu0 %918
    %921 = vset.pattern.permute.xlu0 5
    %922 = vperm.xlu0 %921, %v225
    %v923 = vpop.permute.xlu0 %922
    %925 = vset.pattern.permute.xlu0 5
    %926 = vperm.xlu0 %925, %v226
    %v927 = vpop.permute.xlu0 %926
    %929 = vset.pattern.permute.xlu0 5
    %930 = vperm.xlu0 %929, %v227
    %v931 = vpop.permute.xlu0 %930
    %933 = vset.pattern.permute.xlu0 5
    %934 = vperm.xlu0 %933, %v228
    %v935 = vpop.permute.xlu0 %934
    %937 = vset.pattern.permute.xlu0 5
    %938 = vperm.xlu0 %937, %v229
    %v939 = vpop.permute.xlu0 %938
    %941 = vset.pattern.permute.xlu0 5
    %942 = vperm.xlu0 %941, %v230
    %v943 = vpop.permute.xlu0 %942
    %945 = vset.pattern.permute.xlu0 5
    %946 = vperm.xlu0 %945, %v231
    %v947 = vpop.permute.xlu0 %946
    %949 = vset.pattern.permute.xlu0 5
    %950 = vperm.xlu0 %949, %v232
    %v951 = vpop.permute.xlu0 %950
    %953 = vset.pattern.permute.xlu0 5
    %954 = vperm.xlu0 %953, %v233
    %v955 = vpop.permute.xlu0 %954
    %957 = vset.pattern.permute.xlu0 5
    %958 = vperm.xlu0 %957, %v234
    %v959 = vpop.permute.xlu0 %958
    %961 = vset.pattern.permute.xlu0 5
    %962 = vperm.xlu0 %961, %v235
    %v963 = vpop.permute.xlu0 %962
    %965 = vset.pattern.permute.xlu0 5
    %966 = vperm.xlu0 %965, %v236
    %v967 = vpop.permute.xlu0 %966
    %969 = vset.pattern.permute.xlu0 5
    %970 = vperm.xlu0 %969, %v237
    %v971 = vpop.permute.xlu0 %970
    %973 = vset.pattern.permute.xlu0 5
    %974 = vperm.xlu0 %973, %v238
    %v975 = vpop.permute.xlu0 %974
    %977 = vset.pattern.permute.xlu0 5
    %978 = vperm.xlu0 %977, %v239
    %v979 = vpop.permute.xlu0 %978
    %v981 = vperm.slane %v916, 0
    %v982 = vadd.f32 %v919, %v981
    %v983 = vadd.f32 %v923, %v981
    %v984 = vadd.f32 %v927, %v981
    %v985 = vadd.f32 %v931, %v981
    %v986 = vadd.f32 %v935, %v981
    %v987 = vadd.f32 %v939, %v981
    %v988 = vadd.f32 %v943, %v981
    %v989 = vadd.f32 %v947, %v981
    %v990 = vadd.f32 %v951, %v981
    %v991 = vadd.f32 %v955, %v981
    %v992 = vadd.f32 %v959, %v981
    %v993 = vadd.f32 %v963, %v981
    %v994 = vadd.f32 %v967, %v981
    %v995 = vadd.f32 %v971, %v981
    %v996 = vadd.f32 %v975, %v981
    %v997 = vadd.f32 %v979, %v981
    %v998 = vtanh.pop %v982
    %v999 = vtanh.pop %v983
    %v1000 = vtanh.pop %v984
    %v1001 = vtanh.pop %v985
    %v1002 = vtanh.pop %v986
    %v1003 = vtanh.pop %v987
    %v1004 = vtanh.pop %v988
    %v1005 = vtanh.pop %v989
    %v1006 = vtanh.pop %v990
    %v1007 = vtanh.pop %v991
    %v1008 = vtanh.pop %v992
    %v1009 = vtanh.pop %v993
    %v1010 = vtanh.pop %v994
    %v1011 = vtanh.pop %v995
    %v1012 = vtanh.pop %v996
    %v1013 = vtanh.pop %v997
    %v1014 = vstv %s915
    %v1015 = vmul.f32 %v1014, %v998
    %v1016 = vmul.f32 %v1014, %v999
    %v1017 = vmul.f32 %v1014, %v1000
    %v1018 = vmul.f32 %v1014, %v1001
    %v1019 = vmul.f32 %v1014, %v1002
    %v1020 = vmul.f32 %v1014, %v1003
    %v1021 = vmul.f32 %v1014, %v1004
    %v1022 = vmul.f32 %v1014, %v1005
    %v1023 = vmul.f32 %v1014, %v1006
    %v1024 = vmul.f32 %v1014, %v1007
    %v1025 = vmul.f32 %v1014, %v1008
    %v1026 = vmul.f32 %v1014, %v1009
    %v1027 = vmul.f32 %v1014, %v1010
    %v1028 = vmul.f32 %v1014, %v1011
    %v1029 = vmul.f32 %v1014, %v1012
    %v1030 = vmul.f32 %v1014, %v1013
    %v1031 = vadd.f32 %v899, %v1015
    %v1032 = vadd.f32 %v900, %v1016
    %v1033 = vadd.f32 %v901, %v1017
    %v1034 = vadd.f32 %v902, %v1018
    %v1035 = vadd.f32 %v903, %v1019
    %v1036 = vadd.f32 %v904, %v1020
    %v1037 = vadd.f32 %v905, %v1021
    %v1038 = vadd.f32 %v906, %v1022
    %v1039 = vadd.f32 %v907, %v1023
    %v1040 = vadd.f32 %v908, %v1024
    %v1041 = vadd.f32 %v909, %v1025
    %v1042 = vadd.f32 %v910, %v1026
    %v1043 = vadd.f32 %v911, %v1027
    %v1044 = vadd.f32 %v912, %v1028
    %v1045 = vadd.f32 %v913, %v1029
    %v1046 = vadd.f32 %v914, %v1030
    %s1047 = sld [smem:[#allocation5 + $0x6]]
    %v1048 = vld [vmem:[#allocation3 + $0x6] sm:$0x1]
    %1049 = vset.pattern.permute.xlu0 6
    %1050 = vperm.xlu0 %1049, %v224
    %v1051 = vpop.permute.xlu0 %1050
    %1053 = vset.pattern.permute.xlu0 6
    %1054 = vperm.xlu0 %1053, %v225
    %v1055 = vpop.permute.xlu0 %1054
    %1057 = vset.pattern.permute.xlu0 6
    %1058 = vperm.xlu0 %1057, %v226
    %v1059 = vpop.permute.xlu0 %1058
    %1061 = vset.pattern.permute.xlu0 6
    %1062 = vperm.xlu0 %1061, %v227
    %v1063 = vpop.permute.xlu0 %1062
    %1065 = vset.pattern.permute.xlu0 6
    %1066 = vperm.xlu0 %1065, %v228
    %v1067 = vpop.permute.xlu0 %1066
    %1069 = vset.pattern.permute.xlu0 6
    %1070 = vperm.xlu0 %1069, %v229
    %v1071 = vpop.permute.xlu0 %1070
    %1073 = vset.pattern.permute.xlu0 6
    %1074 = vperm.xlu0 %1073, %v230
    %v1075 = vpop.permute.xlu0 %1074
    %1077 = vset.pattern.permute.xlu0 6
    %1078 = vperm.xlu0 %1077, %v231
    %v1079 = vpop.permute.xlu0 %1078
    %1081 = vset.pattern.permute.xlu0 6
    %1082 = vperm.xlu0 %1081, %v232
    %v1083 = vpop.permute.xlu0 %1082
    %1085 = vset.pattern.permute.xlu0 6
    %1086 = vperm.xlu0 %1085, %v233
    %v1087 = vpop.permute.xlu0 %1086
    %1089 = vset.pattern.permute.xlu0 6
    %1090 = vperm.xlu0 %1089, %v234
    %v1091 = vpop.permute.xlu0 %1090
    %1093 = vset.pattern.permute.xlu0 6
    %1094 = vperm.xlu0 %1093, %v235
    %v1095 = vpop.permute.xlu0 %1094
    %1097 = vset.pattern.permute.xlu0 6
    %1098 = vperm.xlu0 %1097, %v236
    %v1099 = vpop.permute.xlu0 %1098
    %1101 = vset.pattern.permute.xlu0 6
    %1102 = vperm.xlu0 %1101, %v237
    %v1103 = vpop.permute.xlu0 %1102
    %1105 = vset.pattern.permute.xlu0 6
    %1106 = vperm.xlu0 %1105, %v238
    %v1107 = vpop.permute.xlu0 %1106
    %1109 = vset.pattern.permute.xlu0 6
    %1110 = vperm.xlu0 %1109, %v239
    %v1111 = vpop.permute.xlu0 %1110
    %v1113 = vperm.slane %v1048, 0
    %v1114 = vadd.f32 %v1051, %v1113
    %v1115 = vadd.f32 %v1055, %v1113
    %v1116 = vadd.f32 %v1059, %v1113
    %v1117 = vadd.f32 %v1063, %v1113
    %v1118 = vadd.f32 %v1067, %v1113
    %v1119 = vadd.f32 %v1071, %v1113
    %v1120 = vadd.f32 %v1075, %v1113
    %v1121 = vadd.f32 %v1079, %v1113
    %v1122 = vadd.f32 %v1083, %v1113
    %v1123 = vadd.f32 %v1087, %v1113
    %v1124 = vadd.f32 %v1091, %v1113
    %v1125 = vadd.f32 %v1095, %v1113
    %v1126 = vadd.f32 %v1099, %v1113
    %v1127 = vadd.f32 %v1103, %v1113
    %v1128 = vadd.f32 %v1107, %v1113
    %v1129 = vadd.f32 %v1111, %v1113
    %v1130 = vtanh.pop %v1114
    %v1131 = vtanh.pop %v1115
    %v1132 = vtanh.pop %v1116
    %v1133 = vtanh.pop %v1117
    %v1134 = vtanh.pop %v1118
    %v1135 = vtanh.pop %v1119
    %v1136 = vtanh.pop %v1120
    %v1137 = vtanh.pop %v1121
    %v1138 = vtanh.pop %v1122
    %v1139 = vtanh.pop %v1123
    %v1140 = vtanh.pop %v1124
    %v1141 = vtanh.pop %v1125
    %v1142 = vtanh.pop %v1126
    %v1143 = vtanh.pop %v1127
    %v1144 = vtanh.pop %v1128
    %v1145 = vtanh.pop %v1129
    %v1146 = vstv %s1047
    %v1147 = vmul.f32 %v1146, %v1130
    %v1148 = vmul.f32 %v1146, %v1131
    %v1149 = vmul.f32 %v1146, %v1132
    %v1150 = vmul.f32 %v1146, %v1133
    %v1151 = vmul.f32 %v1146, %v1134
    %v1152 = vmul.f32 %v1146, %v1135
    %v1153 = vmul.f32 %v1146, %v1136
    %v1154 = vmul.f32 %v1146, %v1137
    %v1155 = vmul.f32 %v1146, %v1138
    %v1156 = vmul.f32 %v1146, %v1139
    %v1157 = vmul.f32 %v1146, %v1140
    %v1158 = vmul.f32 %v1146, %v1141
    %v1159 = vmul.f32 %v1146, %v1142
    %v1160 = vmul.f32 %v1146, %v1143
    %v1161 = vmul.f32 %v1146, %v1144
    %v1162 = vmul.f32 %v1146, %v1145
    %v1163 = vadd.f32 %v1031, %v1147
    %v1164 = vadd.f32 %v1032, %v1148
    %v1165 = vadd.f32 %v1033, %v1149
    %v1166 = vadd.f32 %v1034, %v1150
    %v1167 = vadd.f32 %v1035, %v1151
    %v1168 = vadd.f32 %v1036, %v1152
    %v1169 = vadd.f32 %v1037, %v1153
    %v1170 = vadd.f32 %v1038, %v1154
    %v1171 = vadd.f32 %v1039, %v1155
    %v1172 = vadd.f32 %v1040, %v1156
    %v1173 = vadd.f32 %v1041, %v1157
    %v1174 = vadd.f32 %v1042, %v1158
    %v1175 = vadd.f32 %v1043, %v1159
    %v1176 = vadd.f32 %v1044, %v1160
    %v1177 = vadd.f32 %v1045, %v1161
    %v1178 = vadd.f32 %v1046, %v1162
    %s1179 = sld [smem:[#allocation5 + $0x7]]
    %v1180 = vld [vmem:[#allocation3 + $0x7] sm:$0x1]
    %1181 = vset.pattern.permute.xlu0 7
    %1182 = vperm.xlu0 %1181, %v224
    %v1183 = vpop.permute.xlu0 %1182
    %1185 = vset.pattern.permute.xlu0 7
    %1186 = vperm.xlu0 %1185, %v225
    %v1187 = vpop.permute.xlu0 %1186
    %1189 = vset.pattern.permute.xlu0 7
    %1190 = vperm.xlu0 %1189, %v226
    %v1191 = vpop.permute.xlu0 %1190
    %1193 = vset.pattern.permute.xlu0 7
    %1194 = vperm.xlu0 %1193, %v227
    %v1195 = vpop.permute.xlu0 %1194
    %1197 = vset.pattern.permute.xlu0 7
    %1198 = vperm.xlu0 %1197, %v228
    %v1199 = vpop.permute.xlu0 %1198
    %1201 = vset.pattern.permute.xlu0 7
    %1202 = vperm.xlu0 %1201, %v229
    %v1203 = vpop.permute.xlu0 %1202
    %1205 = vset.pattern.permute.xlu0 7
    %1206 = vperm.xlu0 %1205, %v230
    %v1207 = vpop.permute.xlu0 %1206
    %1209 = vset.pattern.permute.xlu0 7
    %1210 = vperm.xlu0 %1209, %v231
    %v1211 = vpop.permute.xlu0 %1210
    %1213 = vset.pattern.permute.xlu0 7
    %1214 = vperm.xlu0 %1213, %v232
    %v1215 = vpop.permute.xlu0 %1214
    %1217 = vset.pattern.permute.xlu0 7
    %1218 = vperm.xlu0 %1217, %v233
    %v1219 = vpop.permute.xlu0 %1218
    %1221 = vset.pattern.permute.xlu0 7
    %1222 = vperm.xlu0 %1221, %v234
    %v1223 = vpop.permute.xlu0 %1222
    %1225 = vset.pattern.permute.xlu0 7
    %1226 = vperm.xlu0 %1225, %v235
    %v1227 = vpop.permute.xlu0 %1226
    %1229 = vset.pattern.permute.xlu0 7
    %1230 = vperm.xlu0 %1229, %v236
    %v1231 = vpop.permute.xlu0 %1230
    %1233 = vset.pattern.permute.xlu0 7
    %1234 = vperm.xlu0 %1233, %v237
    %v1235 = vpop.permute.xlu0 %1234
    %1237 = vset.pattern.permute.xlu0 7
    %1238 = vperm.xlu0 %1237, %v238
    %v1239 = vpop.permute.xlu0 %1238
    %1241 = vset.pattern.permute.xlu0 7
    %1242 = vperm.xlu0 %1241, %v239
    %v1243 = vpop.permute.xlu0 %1242
    %v1245 = vperm.slane %v1180, 0
    %v1246 = vadd.f32 %v1183, %v1245
    %v1247 = vadd.f32 %v1187, %v1245
    %v1248 = vadd.f32 %v1191, %v1245
    %v1249 = vadd.f32 %v1195, %v1245
    %v1250 = vadd.f32 %v1199, %v1245
    %v1251 = vadd.f32 %v1203, %v1245
    %v1252 = vadd.f32 %v1207, %v1245
    %v1253 = vadd.f32 %v1211, %v1245
    %v1254 = vadd.f32 %v1215, %v1245
    %v1255 = vadd.f32 %v1219, %v1245
    %v1256 = vadd.f32 %v1223, %v1245
    %v1257 = vadd.f32 %v1227, %v1245
    %v1258 = vadd.f32 %v1231, %v1245
    %v1259 = vadd.f32 %v1235, %v1245
    %v1260 = vadd.f32 %v1239, %v1245
    %v1261 = vadd.f32 %v1243, %v1245
    %v1262 = vtanh.pop %v1246
    %v1263 = vtanh.pop %v1247
    %v1264 = vtanh.pop %v1248
    %v1265 = vtanh.pop %v1249
    %v1266 = vtanh.pop %v1250
    %v1267 = vtanh.pop %v1251
    %v1268 = vtanh.pop %v1252
    %v1269 = vtanh.pop %v1253
    %v1270 = vtanh.pop %v1254
    %v1271 = vtanh.pop %v1255
    %v1272 = vtanh.pop %v1256
    %v1273 = vtanh.pop %v1257
    %v1274 = vtanh.pop %v1258
    %v1275 = vtanh.pop %v1259
    %v1276 = vtanh.pop %v1260
    %v1277 = vtanh.pop %v1261
    %v1278 = vstv %s1179
    %v1279 = vmul.f32 %v1278, %v1262
    %v1280 = vmul.f32 %v1278, %v1263
    %v1281 = vmul.f32 %v1278, %v1264
    %v1282 = vmul.f32 %v1278, %v1265
    %v1283 = vmul.f32 %v1278, %v1266
    %v1284 = vmul.f32 %v1278, %v1267
    %v1285 = vmul.f32 %v1278, %v1268
    %v1286 = vmul.f32 %v1278, %v1269
    %v1287 = vmul.f32 %v1278, %v1270
    %v1288 = vmul.f32 %v1278, %v1271
    %v1289 = vmul.f32 %v1278, %v1272
    %v1290 = vmul.f32 %v1278, %v1273
    %v1291 = vmul.f32 %v1278, %v1274
    %v1292 = vmul.f32 %v1278, %v1275
    %v1293 = vmul.f32 %v1278, %v1276
    %v1294 = vmul.f32 %v1278, %v1277
    %v1295 = vadd.f32 %v1163, %v1279
    %v1296 = vadd.f32 %v1164, %v1280
    %v1297 = vadd.f32 %v1165, %v1281
    %v1298 = vadd.f32 %v1166, %v1282
    %v1299 = vadd.f32 %v1167, %v1283
    %v1300 = vadd.f32 %v1168, %v1284
    %v1301 = vadd.f32 %v1169, %v1285
    %v1302 = vadd.f32 %v1170, %v1286
    %v1303 = vadd.f32 %v1171, %v1287
    %v1304 = vadd.f32 %v1172, %v1288
    %v1305 = vadd.f32 %v1173, %v1289
    %v1306 = vadd.f32 %v1174, %v1290
    %v1307 = vadd.f32 %v1175, %v1291
    %v1308 = vadd.f32 %v1176, %v1292
    %v1309 = vadd.f32 %v1177, %v1293
    %v1310 = vadd.f32 %v1178, %v1294
    %v1311 = vmul.f32 %v1295, 0.5
    %v1312 = vmul.f32 %v1296, 0.5
    %v1313 = vmul.f32 %v1297, 0.5
    %v1314 = vmul.f32 %v1298, 0.5
    %v1315 = vmul.f32 %v1299, 0.5
    %v1316 = vmul.f32 %v1300, 0.5
    %v1317 = vmul.f32 %v1301, 0.5
    %v1318 = vmul.f32 %v1302, 0.5
    %v1319 = vmul.f32 %v1303, 0.5
    %v1320 = vmul.f32 %v1304, 0.5
    %v1321 = vmul.f32 %v1305, 0.5
    %v1322 = vmul.f32 %v1306, 0.5
    %v1323 = vmul.f32 %v1307, 0.5
    %v1324 = vmul.f32 %v1308, 0.5
    %v1325 = vmul.f32 %v1309, 0.5
    %v1326 = vmul.f32 %v1310, 0.5
    %v1327 = vtanh.pop %v1311
    %v1328 = vtanh.pop %v1312
    %v1329 = vtanh.pop %v1313
    %v1330 = vtanh.pop %v1314
    %v1331 = vtanh.pop %v1315
    %v1332 = vtanh.pop %v1316
    %v1333 = vtanh.pop %v1317
    %v1334 = vtanh.pop %v1318
    %v1335 = vtanh.pop %v1319
    %v1336 = vtanh.pop %v1320
    %v1337 = vtanh.pop %v1321
    %v1338 = vtanh.pop %v1322
    %v1339 = vtanh.pop %v1323
    %v1340 = vtanh.pop %v1324
    %v1341 = vtanh.pop %v1325
    %v1342 = vtanh.pop %v1326
    %1343 = vxpose.xlu0.b32.start [1/16] %v1327, 128
    %1344 = vxpose.xlu0.b32.cont [2/16] %v1328, 128
    %1345 = vxpose.xlu0.b32.cont [3/16] %v1329, 128
    %1346 = vxpose.xlu0.b32.cont [4/16] %v1330, 128
    %1347 = vxpose.xlu0.b32.cont [5/16] %v1331, 128
    %1348 = vxpose.xlu0.b32.cont [6/16] %v1332, 128
    %1349 = vxpose.xlu0.b32.cont [7/16] %v1333, 128
    %1350 = vxpose.xlu0.b32.cont [8/16] %v1334, 128
    %1351 = vxpose.xlu0.b32.cont [9/16] %v1335, 128
    %1352 = vxpose.xlu0.b32.cont [10/16] %v1336, 128
    %1353 = vxpose.xlu0.b32.cont [11/16] %v1337, 128
    %1354 = vxpose.xlu0.b32.cont [12/16] %v1338, 128
    %1355 = vxpose.xlu0.b32.cont [13/16] %v1339, 128
    %1356 = vxpose.xlu0.b32.cont [14/16] %v1340, 128
    %1357 = vxpose.xlu0.b32.cont [15/16] %v1341, 128
    %1358 = vxpose.xlu0.b32.end [16/16] %v1342, 128
    %v1359 = vpop.trf.xlu0
    %v1360 = vpop.trf.xlu0
    %v1361 = vpop.trf.xlu0
    %v1362 = vpop.trf.xlu0
    %v1363 = vpop.trf.xlu0
    %v1364 = vpop.trf.xlu0
    %v1365 = vpop.trf.xlu0
    %v1366 = vpop.trf.xlu0
    %v1367 = vpop.trf.xlu0
    %v1368 = vpop.trf.xlu0
    %v1369 = vpop.trf.xlu0
    %v1370 = vpop.trf.xlu0
    %v1371 = vpop.trf.xlu0
    %v1372 = vpop.trf.xlu0
    %v1373 = vpop.trf.xlu0
    %v1374 = vpop.trf.xlu0
    %v1375 = vadd.f32 %v1327, %v1359
    %v1376 = vadd.f32 %v1328, %v1360
    %v1377 = vadd.f32 %v1329, %v1361
    %v1378 = vadd.f32 %v1330, %v1362
    %v1379 = vadd.f32 %v1331, %v1363
    %v1380 = vadd.f32 %v1332, %v1364
    %v1381 = vadd.f32 %v1333, %v1365
    %v1382 = vadd.f32 %v1334, %v1366
    %v1383 = vadd.f32 %v1335, %v1367
    %v1384 = vadd.f32 %v1336, %v1368
    %v1385 = vadd.f32 %v1337, %v1369
    %v1386 = vadd.f32 %v1338, %v1370
    %v1387 = vadd.f32 %v1339, %v1371
    %v1388 = vadd.f32 %v1340, %v1372
    %v1389 = vadd.f32 %v1341, %v1373
    %v1390 = vadd.f32 %v1342, %v1374
    %v1391 = vmul.f32 %v1375, 0.25
    %v1392 = vmul.f32 %v1376, 0.25
    %v1393 = vmul.f32 %v1377, 0.25
    %v1394 = vmul.f32 %v1378, 0.25
    %v1395 = vmul.f32 %v1379, 0.25
    %v1396 = vmul.f32 %v1380, 0.25
    %v1397 = vmul.f32 %v1381, 0.25
    %v1398 = vmul.f32 %v1382, 0.25
    %v1399 = vmul.f32 %v1383, 0.25
    %v1400 = vmul.f32 %v1384, 0.25
    %v1401 = vmul.f32 %v1385, 0.25
    %v1402 = vmul.f32 %v1386, 0.25
    %v1403 = vmul.f32 %v1387, 0.25
    %v1404 = vmul.f32 %v1388, 0.25
    %v1405 = vmul.f32 %v1389, 0.25
    %v1406 = vmul.f32 %v1390, 0.25
    %v1407 = vadd.f32 %v1391, 0.5
    %v1408 = vadd.f32 %v1392, 0.5
    %v1409 = vadd.f32 %v1393, 0.5
    %v1410 = vadd.f32 %v1394, 0.5
    %v1411 = vadd.f32 %v1395, 0.5
    %v1412 = vadd.f32 %v1396, 0.5
    %v1413 = vadd.f32 %v1397, 0.5
    %v1414 = vadd.f32 %v1398, 0.5
    %v1415 = vadd.f32 %v1399, 0.5
    %v1416 = vadd.f32 %v1400, 0.5
    %v1417 = vadd.f32 %v1401, 0.5
    %v1418 = vadd.f32 %v1402, 0.5
    %v1419 = vadd.f32 %v1403, 0.5
    %v1420 = vadd.f32 %v1404, 0.5
    %v1421 = vadd.f32 %v1405, 0.5
    %v1422 = vadd.f32 %v1406, 0.5
    %1423 = vst [vmem:[#allocation8] sm:$0xff] %v1407
    %1424 = vst [vmem:[#allocation8 + $0x8] sm:$0xff] %v1408
    %1425 = vst [vmem:[#allocation8 + $0x10] sm:$0xff] %v1409
    %1426 = vst [vmem:[#allocation8 + $0x18] sm:$0xff] %v1410
    %1427 = vst [vmem:[#allocation8 + $0x20] sm:$0xff] %v1411
    %1428 = vst [vmem:[#allocation8 + $0x28] sm:$0xff] %v1412
    %1429 = vst [vmem:[#allocation8 + $0x30] sm:$0xff] %v1413
    %1430 = vst [vmem:[#allocation8 + $0x38] sm:$0xff] %v1414
    %1431 = vst [vmem:[#allocation8 + $0x40] sm:$0xff] %v1415
    %1432 = vst [vmem:[#allocation8 + $0x48] sm:$0xff] %v1416
    %1433 = vst [vmem:[#allocation8 + $0x50] sm:$0xff] %v1417
    %1434 = vst [vmem:[#allocation8 + $0x58] sm:$0xff] %v1418
    %1435 = vst [vmem:[#allocation8 + $0x60] sm:$0xff] %v1419
    %1436 = vst [vmem:[#allocation8 + $0x68] sm:$0xff] %v1420
    %1437 = vst [vmem:[#allocation8 + $0x70] sm:$0xff] %v1421
    %1438 = vst [vmem:[#allocation8 + $0x78] sm:$0xff] %v1422
    // Predicated region
    $region34: #{tpu_custom_call.1} parent=1 // pred_check
      _
    $region35: #{tpu_custom_call.1} parent=1 // pred_check_branch
      %1440 = sbr.rel (0) target = $region37
    $region36: #{tpu_custom_call.1} parent=1 // pred_region
      %1442 = vsyncadd [#allocation6], 0
      %s1443 = sshll.u32 [#allocation8], 4
      %s1444 = int_to_ptr.vmem [resolvable:$true] %s1443
      %s1445 = sshll.u32 %s7, 4
      %s1446 = int_to_ptr.hbm [resolvable:$true] %s1445
      %1451 = dma.vmem_to_hbm [thread:$0]  %s1444, 2048, %s1446, [#allocation6], 128, 128, 8
    $region37: #{tpu_custom_call.1} parent=1 // pred_fallthru
      _
    // Predicated region
    $region38: #{tpu_custom_call.1} parent=1 // pred_check
      _
    $region39: #{tpu_custom_call.1} parent=1 // pred_check_branch
      %1453 = sbr.rel (0) target = $region41
    $region40: #{tpu_custom_call.1} parent=1 // pred_region
      %1455 = dma.done [#allocation6], 2048
    $region41: #{tpu_custom_call.1} parent=1 // pred_fallthru
      _
    %1456 = vsyncpa [#allocation6], 1
    %1457 = vsyncpa [#allocation7], 1

</llo_original>
